<compile_context>
chip_gen: v7x
topology: tpu7x:2x2x1
jax: 0.10.0
libtpu: 0.0.40
codegen_flags: <defaults>
</compile_context>

<pallas_src>
import functools
import math

import jax
import jax.numpy as jnp
from jax.experimental import pallas as pl
from jax.experimental.pallas import tpu as pltpu


def _round_up(x, m):
    return ((x + m - 1) // m) * m


@functools.lru_cache(maxsize=None)
def _default_act_dtype():
    """bf16 activations on chips with native bf16 VALU (v6e/v7x), else f32 (R5)."""
    try:
        kind = jax.devices()[0].device_kind.lower()
    except Exception:
        return jnp.float32
    for old in ("v2", "v3", "v4", "v5"):
        if old in kind:
            return jnp.float32
    if ("v6" in kind) or ("v7" in kind):
        return jnp.bfloat16
    return jnp.float32


@functools.lru_cache(maxsize=None)
def _stride0_broadcast_ok() -> bool:
    """Feature-probe stride-0 sublane-broadcast loads (R4); fall back if unsupported."""
    def _probe(x_ref, o_ref):
        o_ref[...] = x_ref[pl.ds(1, 32, stride=0), :]

    try:
        x = jnp.arange(4 * 128, dtype=jnp.float32).reshape(4, 128)
        out = pl.pallas_call(
            _probe, out_shape=jax.ShapeDtypeStruct((32, 128), jnp.float32))(x)
        out = jax.block_until_ready(out)
        return bool(jnp.all(out == jnp.broadcast_to(x[1:2, :], (32, 128))))
    except Exception:
        return False


def _choose_tile(B, tile_b):
    """>=2 grid steps when possible (R2, v7x megacore) with minimal last-tile padding."""
    n_steps = max(2, pl.cdiv(B, tile_b))
    tile = max(128, _round_up(pl.cdiv(B, n_steps), 128))
    b_pad = _round_up(B, tile)
    return tile, b_pad, b_pad // tile


def _make_kernel(act_dtype, use_stride0, mm_precision):
    def kernel(x_ref, w1_ref, b1_ref, w2_ref, b2_ref, w3_ref, b3_ref, o_ref):
        tile = x_ref.shape[1]
        w1 = w1_ref[...]                                   # (32, 4) act_dtype

        def xrow(k):
            if use_stride0:
                # R4: stride-0 sublane-broadcast -> row k replicated to 32 sublanes
                # by the load unit instead of a VPU/XLU splat.
                return x_ref[pl.ds(k, 32, stride=0), :]
            return jnp.broadcast_to(x_ref[k:k + 1, :], (32, tile))

        # ---- fc1 (K=4): bias-initialised accumulator + 4 VPU FMAs (no padded MXU) --
        acc = jnp.broadcast_to(b1_ref[...], (32, tile)) + w1[:, 0:1] * xrow(0)
        for k in range(1, 4):                              # unrolled at trace time
            acc = acc + w1[:, k:k + 1] * xrow(k)
        h1 = jnp.maximum(acc, 0).astype(act_dtype)         # (32, tile)

        # ---- fc2 (32x32): the only MXU layer, f32 accumulation (R5 precision) ------
        h2 = jnp.dot(w2_ref[...], h1, precision=mm_precision,
                     preferred_element_type=jnp.float32)   # (32, tile) f32
        h2 = jnp.maximum(h2 + b2_ref[...], 0.0)

        # ---- fc3 (N=1): elementwise mul + 32-wide sublane reduce (XLU), no MXU -----
        out = jnp.sum(w3_ref[...] * h2, axis=0, keepdims=True) + b3_ref[...]
        o_ref[...] = out.astype(o_ref.dtype)               # (1, tile) lane-dense vst

    return kernel


def net_forward_features_first(x_t, params, *, tile_b=32768, act_dtype=None):
    """Preferred entry point (R1): x_t is (4, B), features-first, so no HBM relayout
    of x is required anywhere.  Returns (1, B) float32."""
    assert x_t.ndim == 2 and x_t.shape[0] == 4, "expected x_t of shape (4, B)"
    B = x_t.shape[1]
    if act_dtype is None:
        act_dtype = _default_act_dtype()
    adt = jnp.dtype(act_dtype)

    tile_b = max(128, _round_up(int(tile_b), 128))
    tile, b_pad, grid = _choose_tile(B, tile_b)

    use_s0 = (adt.itemsize == 4) and _stride0_broadcast_ok()      # R4
    mm_precision = (jax.lax.Precision.HIGHEST if adt == jnp.dtype(jnp.float32)
                    else jax.lax.Precision.DEFAULT)               # R5

    x_t = x_t.astype(adt)                                         # bf16 halves x DMA
    if b_pad != B:
        x_t = jnp.pad(x_t, ((0, 0), (0, b_pad - B)))

    # Weights -> (out_features, in_features); fc1/fc2 operands in act dtype,
    # post-MXU bias / fc3 params stay f32.
    w1t = params["w1"].T.astype(adt)            # (32, 4)
    b1t = params["b1"].T.astype(adt)            # (32, 1)
    w2t = params["w2"].T.astype(adt)            # (32, 32)
    b2t = params["b2"].T.astype(jnp.float32)    # (32, 1)
    w3c = params["w3"].astype(jnp.float32)      # (32, 1), used elementwise
    b3c = params["b3"].astype(jnp.float32)      # (1, 1)

    const = lambda i: (0, 0)                    # resident weights/biases (R6)
    weight_bytes = (32 * 4 + 32 + 32 * 32) * adt.itemsize + (32 + 32 + 1) * 4
    cost = pl.CostEstimate(
        flops=2 * b_pad * (4 * 32 + 32 * 32 + 32),
        transcendentals=0,
        bytes_accessed=b_pad * 4 * adt.itemsize + b_pad * 4 + weight_bytes,
    )

    out_t = pl.pallas_call(
        _make_kernel(adt, use_s0, mm_precision),
        out_shape=jax.ShapeDtypeStruct((1, b_pad), jnp.float32),
        grid=(grid,),
        in_specs=[
            pl.BlockSpec((4, tile), lambda i: (0, i)),    # x tile (lane-dense)
            pl.BlockSpec((32, 4), const),
            pl.BlockSpec((32, 1), const),
            pl.BlockSpec((32, 32), const),
            pl.BlockSpec((32, 1), const),
            pl.BlockSpec((32, 1), const),
            pl.BlockSpec((1, 1), const),
        ],
        out_specs=pl.BlockSpec((1, tile), lambda i: (0, i)),
        compiler_params=pltpu.CompilerParams(
            dimension_semantics=("parallel",),            # R2: megacore batch split
            vmem_limit_bytes=48 * 1024 * 1024,            # R3: headroom for TILE_B=32k
        ),
        cost_estimate=cost,
    )(x_t, w1t, b1t, w2t, b2t, w3c, b3c)

    return out_t[:, :B]                                   # drop padded batch lanes


def net_forward(x, params, *, tile_b=32768, act_dtype=None):
    """PyTorch-layout compatibility shim: x is (B, 4).  Does ONE (B,4)->(4,B)
    relayout here; for large B produce x features-first upstream and call
    net_forward_features_first instead (review item R1)."""
    out_t = net_forward_features_first(x.T, params, tile_b=tile_b, act_dtype=act_dtype)
    return out_t.T                                         # (B, 1), PyTorch convention


def _linear_init(key, fan_in, fan_out):
    # Mimic PyTorch nn.Linear default init: U(-1/sqrt(fan_in), 1/sqrt(fan_in)).
    kw, kb = jax.random.split(key)
    bound = 1.0 / math.sqrt(fan_in)
    # Stored as (in_features, out_features) -> reference does x @ W.
    w = jax.random.uniform(kw, (fan_in, fan_out), jnp.float32, -bound, bound)
    b = jax.random.uniform(kb, (1, fan_out), jnp.float32, -bound, bound)
    return w, b


def init_params(key):
    k1, k2, k3 = jax.random.split(key, 3)
    w1, b1 = _linear_init(k1, 4, 32)
    w2, b2 = _linear_init(k2, 32, 32)
    w3, b3 = _linear_init(k3, 32, 1)
    return {"w1": w1, "b1": b1, "w2": w2, "b2": b2, "w3": w3, "b3": b3}


def net_forward_ref(x, params):
    # Pure-JAX reference (f32, HIGHEST precision for PyTorch parity).
    p = jax.lax.Precision.HIGHEST
    h1 = jnp.maximum(jnp.dot(x, params["w1"], precision=p) + params["b1"], 0.0)
    h2 = jnp.maximum(jnp.dot(h1, params["w2"], precision=p) + params["b2"], 0.0)
    return jnp.dot(h2, params["w3"], precision=p) + params["b3"]


if __name__ == "__main__":
    key = jax.random.PRNGKey(0)
    kp, kx, kx2 = jax.random.split(key, 3)
    params = init_params(kp)

    # 1) Small batch, f32 path (exact-parity path), PyTorch (B,4) compat wrapper.
    x = jax.random.normal(kx, (8, 4), dtype=jnp.float32)
    out = jax.block_until_ready(net_forward(x, params, act_dtype=jnp.float32))
    ref = net_forward_ref(x, params)
    assert out.shape == (8, 1)
    assert jnp.allclose(out, ref, atol=1e-5, rtol=1e-5), "mismatch (f32, B=8)"

    # 2) Multi-step grid + padded last tile, features-first entry point (no relayout).
    x2 = jax.random.normal(kx2, (600, 4), dtype=jnp.float32)
    out2 = jax.block_until_ready(
        net_forward_features_first(x2.T, params, tile_b=256, act_dtype=jnp.float32))
    ref2 = net_forward_ref(x2, params)
    assert out2.shape == (1, 600)
    assert jnp.allclose(out2.T, ref2, atol=1e-5, rtol=1e-5), "mismatch (f32, B=600)"

    # 3) bf16-activation path (default on v6e/v7x); looser tolerance vs f32 reference.
    out3 = jax.block_until_ready(net_forward(x2, params, act_dtype=jnp.bfloat16))
    assert out3.shape == (600, 1)
    err3 = jnp.abs(out3 - ref2)
    assert float(jnp.mean(err3)) < 3e-2 and float(jnp.max(err3)) < 2e-1, \
        "mismatch (bf16, B=600)"

    # 4) Auto-detected default path.
    out4 = jax.block_until_ready(net_forward(x, params))
    if _default_act_dtype() == jnp.float32:
        assert jnp.allclose(out4, ref, atol=1e-5, rtol=1e-5), "mismatch (default path)"
    else:
        assert jnp.allclose(out4, ref, atol=2e-1, rtol=1e-1), "mismatch (default path)"

    print("KERNEL_OK")
</pallas_src>

<mosaic_0001>
module attributes {stable_mosaic.version = 11 : i64} {
  func.func @_probe(%arg0: memref<4x128xf32, #tpu.memory_space<vmem>>, %arg1: memref<32x128xf32, #tpu.memory_space<vmem>>) attributes {dimension_semantics = [], scalar_prefetch = 0 : i64, scratch_operands = 0 : i64, tpu.core_type = #tpu.core_type<tc>} {
    %c1 = arith.constant 1 : index
    %c0 = arith.constant 0 : index
    %0 = tpu.strided_load %arg0[%c1, %c0] {strides = array<i32: 0, 1>} : memref<4x128xf32, #tpu.memory_space<vmem>>, vector<32x128xf32>
    %c0_0 = arith.constant 0 : index
    %c0_1 = arith.constant 0 : index
    %1 = vector.load %arg1[%c0_0, %c0_1] : memref<32x128xf32, #tpu.memory_space<vmem>>, vector<32x128xf32>
    tpu.vector_store %arg1[%c0_0, %c0_1], %0 {strides = array<i32>} : memref<32x128xf32, #tpu.memory_space<vmem>>, vector<32x128xf32>,
    return
  }
}

module attributes {stable_mosaic.version = 11 : i64} {
  func.func @kernel(%arg0: i32, %arg1: memref<4x128xf32, #tpu.memory_space<vmem>>, %arg2: memref<32x4xf32, #tpu.memory_space<vmem>>, %arg3: memref<32x1xf32, #tpu.memory_space<vmem>>, %arg4: memref<32x32xf32, #tpu.memory_space<vmem>>, %arg5: memref<32x1xf32, #tpu.memory_space<vmem>>, %arg6: memref<32x1xf32, #tpu.memory_space<vmem>>, %arg7: memref<1x1xf32, #tpu.memory_space<vmem>>, %arg8: memref<1x128xf32, #tpu.memory_space<vmem>>) attributes {dimension_semantics = [#tpu.dimension_semantics<parallel>], iteration_bounds = array<i64: 1>, scalar_prefetch = 0 : i64, scratch_operands = 0 : i64, tpu.core_type = #tpu.core_type<tc>, window_params = [{transform_indices = @transform_0, window_bounds = array<i64: 4, 128>}, {pipeline_mode = #tpu.pipeline_mode<synchronous>, transform_indices = @transform_1, window_bounds = array<i64: 32, 4>}, {pipeline_mode = #tpu.pipeline_mode<synchronous>, transform_indices = @transform_2, window_bounds = array<i64: 32, 1>}, {pipeline_mode = #tpu.pipeline_mode<synchronous>, transform_indices = @transform_3, window_bounds = array<i64: 32, 32>}, {pipeline_mode = #tpu.pipeline_mode<synchronous>, transform_indices = @transform_4, window_bounds = array<i64: 32, 1>}, {pipeline_mode = #tpu.pipeline_mode<synchronous>, transform_indices = @transform_5, window_bounds = array<i64: 32, 1>}, {pipeline_mode = #tpu.pipeline_mode<synchronous>, transform_indices = @transform_6, window_bounds = array<i64: 1, 1>}, {transform_indices = @transform_7, window_bounds = array<i64: 1, 128>}]} {
    %c0 = arith.constant 0 : index
    %c0_0 = arith.constant 0 : index
    %0 = vector.load %arg2[%c0, %c0_0] : memref<32x4xf32, #tpu.memory_space<vmem>>, vector<32x4xf32>
    %c0_1 = arith.constant 0 : index
    %c0_2 = arith.constant 0 : index
    %1 = vector.load %arg3[%c0_1, %c0_2] : memref<32x1xf32, #tpu.memory_space<vmem>>, vector<32x1xf32>
    %2 = vector.shape_cast %1 : vector<32x1xf32> to vector<32x1xf32>
    %3 = vector.broadcast %2 : vector<32x1xf32> to vector<32x128xf32>
    %4 = vector.extract_strided_slice %0 {offsets = [0, 0], sizes = [32, 1], strides = [1, 1]} : vector<32x4xf32> to vector<32x1xf32>
    %c0_3 = arith.constant 0 : index
    %c0_4 = arith.constant 0 : index
    %5 = vector.load %arg1[%c0_3, %c0_4] : memref<4x128xf32, #tpu.memory_space<vmem>>, vector<1x128xf32>
    %6 = vector.shape_cast %5 : vector<1x128xf32> to vector<1x128xf32>
    %7 = vector.broadcast %6 : vector<1x128xf32> to vector<32x128xf32>
    %8 = vector.broadcast %4 : vector<32x1xf32> to vector<32x128xf32>
    %9 = arith.mulf %8, %7 : vector<32x128xf32>
    %10 = arith.addf %3, %9 : vector<32x128xf32>
    %11 = vector.extract_strided_slice %0 {offsets = [0, 1], sizes = [32, 1], strides = [1, 1]} : vector<32x4xf32> to vector<32x1xf32>
    %c1 = arith.constant 1 : index
    %c0_5 = arith.constant 0 : index
    %12 = vector.load %arg1[%c1, %c0_5] : memref<4x128xf32, #tpu.memory_space<vmem>>, vector<1x128xf32>
    %13 = vector.shape_cast %12 : vector<1x128xf32> to vector<1x128xf32>
    %14 = vector.broadcast %13 : vector<1x128xf32> to vector<32x128xf32>
    %15 = vector.broadcast %11 : vector<32x1xf32> to vector<32x128xf32>
    %16 = arith.mulf %15, %14 : vector<32x128xf32>
    %17 = arith.addf %10, %16 : vector<32x128xf32>
    %18 = vector.extract_strided_slice %0 {offsets = [0, 2], sizes = [32, 1], strides = [1, 1]} : vector<32x4xf32> to vector<32x1xf32>
    %c2 = arith.constant 2 : index
    %c0_6 = arith.constant 0 : index
    %19 = vector.load %arg1[%c2, %c0_6] : memref<4x128xf32, #tpu.memory_space<vmem>>, vector<1x128xf32>
    %20 = vector.shape_cast %19 : vector<1x128xf32> to vector<1x128xf32>
    %21 = vector.broadcast %20 : vector<1x128xf32> to vector<32x128xf32>
    %22 = vector.broadcast %18 : vector<32x1xf32> to vector<32x128xf32>
    %23 = arith.mulf %22, %21 : vector<32x128xf32>
    %24 = arith.addf %17, %23 : vector<32x128xf32>
    %25 = vector.extract_strided_slice %0 {offsets = [0, 3], sizes = [32, 1], strides = [1, 1]} : vector<32x4xf32> to vector<32x1xf32>
    %c3 = arith.constant 3 : index
    %c0_7 = arith.constant 0 : index
    %26 = vector.load %arg1[%c3, %c0_7] : memref<4x128xf32, #tpu.memory_space<vmem>>, vector<1x128xf32>
    %27 = vector.shape_cast %26 : vector<1x128xf32> to vector<1x128xf32>
    %28 = vector.broadcast %27 : vector<1x128xf32> to vector<32x128xf32>
    %29 = vector.broadcast %25 : vector<32x1xf32> to vector<32x128xf32>
    %30 = arith.mulf %29, %28 : vector<32x128xf32>
    %31 = arith.addf %24, %30 : vector<32x128xf32>
    %cst = arith.constant 0.000000e+00 : f32
    %32 = vector.broadcast %cst : f32 to vector<32x128xf32>
    %33 = arith.maximumf %31, %32 : vector<32x128xf32>
    %c0_8 = arith.constant 0 : index
    %c0_9 = arith.constant 0 : index
    %34 = vector.load %arg4[%c0_8, %c0_9] : memref<32x32xf32, #tpu.memory_space<vmem>>, vector<32x32xf32>
    %cst_10 = arith.constant dense<0.000000e+00> : vector<32x128xf32>
    %35 = tpu.matmul %34, %33, %cst_10 {dimension_numbers = #tpu.dot_dimension_numbers<[1], [0], [0], [1], [0, 0, 1, 1], [], []>, precision = #tpu.contract_precision<fp32>} : vector<32x32xf32>, vector<32x128xf32>, vector<32x128xf32> -> vector<32x128xf32>
    %c0_11 = arith.constant 0 : index
    %c0_12 = arith.constant 0 : index
    %36 = vector.load %arg5[%c0_11, %c0_12] : memref<32x1xf32, #tpu.memory_space<vmem>>, vector<32x1xf32>
    %37 = vector.broadcast %36 : vector<32x1xf32> to vector<32x128xf32>
    %38 = arith.addf %35, %37 : vector<32x128xf32>
    %cst_13 = arith.constant 0.000000e+00 : f32
    %39 = vector.broadcast %cst_13 : f32 to vector<32x128xf32>
    %40 = arith.maximumf %38, %39 : vector<32x128xf32>
    %c0_14 = arith.constant 0 : index
    %c0_15 = arith.constant 0 : index
    %41 = vector.load %arg6[%c0_14, %c0_15] : memref<32x1xf32, #tpu.memory_space<vmem>>, vector<32x1xf32>
    %42 = vector.broadcast %41 : vector<32x1xf32> to vector<32x128xf32>
    %43 = arith.mulf %42, %40 : vector<32x128xf32>
    %cst_16 = arith.constant dense<0.000000e+00> : vector<128xf32>
    %44 = vector.multi_reduction <add>, %43, %cst_16 [0] : vector<32x128xf32> to vector<128xf32>
    %45 = vector.shape_cast %44 : vector<128xf32> to vector<1x128xf32>
    %c0_17 = arith.constant 0 : index
    %c0_18 = arith.constant 0 : index
    %46 = vector.load %arg7[%c0_17, %c0_18] : memref<1x1xf32, #tpu.memory_space<vmem>>, vector<1x1xf32>
    %47 = vector.broadcast %46 : vector<1x1xf32> to vector<1x128xf32>
    %48 = arith.addf %45, %47 : vector<1x128xf32>
    %c0_19 = arith.constant 0 : index
    %c0_20 = arith.constant 0 : index
    %49 = vector.load %arg8[%c0_19, %c0_20] : memref<1x128xf32, #tpu.memory_space<vmem>>, vector<1x128xf32>
    tpu.vector_store %arg8[%c0_19, %c0_20], %48 {strides = array<i32>} : memref<1x128xf32, #tpu.memory_space<vmem>>, vector<1x128xf32>,
    return
  }
  func.func @transform_0(%arg0: i32) -> (i32, i32) {
    %c0_i32 = arith.constant 0 : i32
    %c0_i32_0 = arith.constant 0 : i32
    return %c0_i32, %arg0 : i32, i32
  }
  func.func @transform_1(%arg0: i32) -> (i32, i32) {
    %c0_i32 = arith.constant 0 : i32
    %c0_i32_0 = arith.constant 0 : i32
    %c0_i32_1 = arith.constant 0 : i32
    return %c0_i32, %c0_i32_0 : i32, i32
  }
  func.func @transform_2(%arg0: i32) -> (i32, i32) {
    %c0_i32 = arith.constant 0 : i32
    %c0_i32_0 = arith.constant 0 : i32
    %c0_i32_1 = arith.constant 0 : i32
    return %c0_i32, %c0_i32_0 : i32, i32
  }
  func.func @transform_3(%arg0: i32) -> (i32, i32) {
    %c0_i32 = arith.constant 0 : i32
    %c0_i32_0 = arith.constant 0 : i32
    %c0_i32_1 = arith.constant 0 : i32
    return %c0_i32, %c0_i32_0 : i32, i32
  }
  func.func @transform_4(%arg0: i32) -> (i32, i32) {
    %c0_i32 = arith.constant 0 : i32
    %c0_i32_0 = arith.constant 0 : i32
    %c0_i32_1 = arith.constant 0 : i32
    return %c0_i32, %c0_i32_0 : i32, i32
  }
  func.func @transform_5(%arg0: i32) -> (i32, i32) {
    %c0_i32 = arith.constant 0 : i32
    %c0_i32_0 = arith.constant 0 : i32
    %c0_i32_1 = arith.constant 0 : i32
    return %c0_i32, %c0_i32_0 : i32, i32
  }
  func.func @transform_6(%arg0: i32) -> (i32, i32) {
    %c0_i32 = arith.constant 0 : i32
    %c0_i32_0 = arith.constant 0 : i32
    %c0_i32_1 = arith.constant 0 : i32
    return %c0_i32, %c0_i32_0 : i32, i32
  }
  func.func @transform_7(%arg0: i32) -> (i32, i32) {
    %c0_i32 = arith.constant 0 : i32
    %c0_i32_0 = arith.constant 0 : i32
    return %c0_i32, %arg0 : i32, i32
  }
}

</mosaic_0001>

<llo_original>
// kernel: tpu_custom_call.1
$region0: #{tpu_custom_call.1}
  #allocation0 [shape = 'u32[]', space=smem, size = 0x4, offset = 0x4, fixed_abs, tag = 'smem constant byte address 0x4 - core index']
  #allocation1 [shape = 'u32[144,128]{1,0:T(1,128)}', space=vmem, size = 0x12000, scoped, tag = 'internal scratch']
  %s0 = inlined_call_operand.hbm [shape: f32[4,128], index: 0, kind: input, shape index: {}]
  %s1 = inlined_call_operand.hbm [shape: f32[32,128], index: 1, kind: output, shape index: {}]
  %s2 = sld [smem:[#allocation0]]
  $region18: #{tpu_custom_call.1} parent=0
    _
  %s4 = ssub.s32 1, %s2
  %s5 = scalar_select 0, %s4, %s2
  $region1: #{tpu_custom_call.1} parent=0
    #allocation2 [shape = 'u8[2048]{0}', space=vmem, size = 0x800, scoped, tag = 'input window, operand 0, single buffered']
    #allocation3 [shape = 's32[1]{0}', space=sflag, size = 0x4, scoped, tag = 'scoped memory for tpu_custom_call.1']
    #allocation4 [shape = 's32[1]{0}', space=sflag, size = 0x4, scoped, tag = 'scoped memory for tpu_custom_call.1']
    #allocation5 [shape = 'u8[16384]{0}', space=vmem, size = 0x4000, scoped, tag = 'output window, operand 0, single buffered']
    %6 = vsyncpa [#allocation3], 0
    %7 = vsyncpa [#allocation4], 0
    // Predicated region
    $region2: #{tpu_custom_call.1} parent=1 // pred_check
      _
    $region3: #{tpu_custom_call.1} parent=1 // pred_check_branch
      %9 = sbr.rel (0) target = $region5
    $region4: #{tpu_custom_call.1} parent=1 // pred_region
      %s11 = ssub.s32 64, 64
      %12 = vsyncadd [#allocation3], %s11
      %s14 = sshll.u32 [#allocation2], 4
      %s15 = int_to_ptr.vmem [resolvable:$true] %s14
      %17 = dma.hbm_to_vmem [thread:$0]  %s0, 64, %s15, [#allocation3]
    $region5: #{tpu_custom_call.1} parent=1 // pred_fallthru
      _
    // Predicated region
    $region6: #{tpu_custom_call.1} parent=1 // pred_check
      _
    $region7: #{tpu_custom_call.1} parent=1 // pred_check_branch
      %19 = sbr.rel (0) target = $region9
    $region8: #{tpu_custom_call.1} parent=1 // pred_region
      %20 = dma.done [#allocation3], 64
    $region9: #{tpu_custom_call.1} parent=1 // pred_fallthru
      _
    %v21 = vld [vmem:[#allocation2 + $0x1] ss:$0 sm:$0xff]
    %22 = vst [vmem:[#allocation5] sm:$0xff] %v21
    %23 = vst [vmem:[#allocation5 + $0x8] sm:$0xff] %v21
    %24 = vst [vmem:[#allocation5 + $0x10] sm:$0xff] %v21
    %25 = vst [vmem:[#allocation5 + $0x18] sm:$0xff] %v21
    // Predicated region
    $region10: #{tpu_custom_call.1} parent=1 // pred_check
      _
    $region11: #{tpu_custom_call.1} parent=1 // pred_check_branch
      %27 = sbr.rel (0) target = $region13
    $region12: #{tpu_custom_call.1} parent=1 // pred_region
      %s29 = ssub.s32 512, 512
      %30 = vsyncadd [#allocation4], %s29
      %s31 = sshll.u32 [#allocation5], 4
      %s32 = int_to_ptr.vmem [resolvable:$true] %s31
      %37 = dma.vmem_to_hbm [thread:$0]  %s32, 512, %s1, [#allocation4], 128, 128, 8
    $region13: #{tpu_custom_call.1} parent=1 // pred_fallthru
      _
    // Predicated region
    $region14: #{tpu_custom_call.1} parent=1 // pred_check
      _
    $region15: #{tpu_custom_call.1} parent=1 // pred_check_branch
      %39 = sbr.rel (0) target = $region17
    $region16: #{tpu_custom_call.1} parent=1 // pred_region
      %40 = dma.done [#allocation4], 512
    $region17: #{tpu_custom_call.1} parent=1 // pred_fallthru
      _
    %41 = vsyncpa [#allocation3], 1
    %42 = vsyncpa [#allocation4], 1

// kernel: tpu_custom_call.1
$region0: #{tpu_custom_call.1}
  #allocation0 [shape = 'u32[]', space=smem, size = 0x4, offset = 0x4, fixed_abs, tag = 'smem constant byte address 0x4 - core index']
  #allocation1 [shape = 'u32[144,128]{1,0:T(1,128)}', space=vmem, size = 0x12000, scoped, tag = 'internal scratch']
  #allocation2 [shape = 'f32[1,1]{1,0:T(1,128)S(1)}', space=vmem, size = 0x200, scoped, tag = 'scoped memory for tpu_custom_call.1']
  %s0 = inlined_call_operand.vmem [shape: f32[4,128], index: 0, kind: input, shape index: {}]
  %s1 = inlined_call_operand.vmem [shape: f32[32,4], index: 1, kind: input, shape index: {}]
  %s2 = inlined_call_operand.vmem [shape: f32[32,1], index: 2, kind: input, shape index: {}]
  %s3 = inlined_call_operand.vmem [shape: f32[32,32], index: 3, kind: input, shape index: {}]
  %s4 = inlined_call_operand.vmem [shape: f32[32,1], index: 4, kind: input, shape index: {}]
  %s5 = inlined_call_operand.vmem [shape: f32[32,1], index: 5, kind: input, shape index: {}]
  %s6 = inlined_call_operand.<no memory space> [shape: f32[1,1], index: 6, kind: input, shape index: {}]
  %s7 = inlined_call_operand.hbm [shape: f32[1,128], index: 7, kind: output, shape index: {}]
  %s8 = sld [smem:[#allocation0]]
  $region38: #{tpu_custom_call.1} parent=0
    _
  %s10 = ssub.s32 1, %s8
  %s11 = scalar_select 0, %s10, %s8
  %v12 = vstv %s6
  %13 = vst [vmem:[#allocation2] sm:$0x1] %v12
  $region1: #{tpu_custom_call.1} parent=0
    #allocation3 [shape = 'u8[512]{0}', space=vmem, size = 0x400, scoped, tag = 'output window, operand 0, single buffered']
    #allocation4 [shape = 's32[1]{0}', space=sflag, size = 0x4, scoped, tag = 'scoped memory for tpu_custom_call.1']
    %14 = vsyncpa [#allocation4], 0
    // Predicated region
    $region2: #{tpu_custom_call.1} parent=1 // pred_check
      _
    $region3: #{tpu_custom_call.1} parent=1 // pred_check_branch
      %16 = sbr.rel (0) target = $region5
    $region4: #{tpu_custom_call.1} parent=1 // pred_region
      _
    $region5: #{tpu_custom_call.1} parent=1 // pred_fallthru
      _
    // Predicated region
    $region6: #{tpu_custom_call.1} parent=1 // pred_check
      _
    $region7: #{tpu_custom_call.1} parent=1 // pred_check_branch
      %18 = sbr.rel (0) target = $region9
    $region8: #{tpu_custom_call.1} parent=1 // pred_region
      _
    $region9: #{tpu_custom_call.1} parent=1 // pred_fallthru
      _
    // Predicated region
    $region10: #{tpu_custom_call.1} parent=1 // pred_check
      _
    $region11: #{tpu_custom_call.1} parent=1 // pred_check_branch
      %20 = sbr.rel (0) target = $region13
    $region12: #{tpu_custom_call.1} parent=1 // pred_region
      _
    $region13: #{tpu_custom_call.1} parent=1 // pred_fallthru
      _
    // Predicated region
    $region14: #{tpu_custom_call.1} parent=1 // pred_check
      _
    $region15: #{tpu_custom_call.1} parent=1 // pred_check_branch
      %22 = sbr.rel (0) target = $region17
    $region16: #{tpu_custom_call.1} parent=1 // pred_region
      _
    $region17: #{tpu_custom_call.1} parent=1 // pred_fallthru
      _
    // Predicated region
    $region18: #{tpu_custom_call.1} parent=1 // pred_check
      _
    $region19: #{tpu_custom_call.1} parent=1 // pred_check_branch
      %24 = sbr.rel (0) target = $region21
    $region20: #{tpu_custom_call.1} parent=1 // pred_region
      _
    $region21: #{tpu_custom_call.1} parent=1 // pred_fallthru
      _
    // Predicated region
    $region22: #{tpu_custom_call.1} parent=1 // pred_check
      _
    $region23: #{tpu_custom_call.1} parent=1 // pred_check_branch
      %26 = sbr.rel (0) target = $region25
    $region24: #{tpu_custom_call.1} parent=1 // pred_region
      _
    $region25: #{tpu_custom_call.1} parent=1 // pred_fallthru
      _
    // Predicated region
    $region26: #{tpu_custom_call.1} parent=1 // pred_check
      _
    $region27: #{tpu_custom_call.1} parent=1 // pred_check_branch
      %28 = sbr.rel (0) target = $region29
    $region28: #{tpu_custom_call.1} parent=1 // pred_region
      _
    $region29: #{tpu_custom_call.1} parent=1 // pred_fallthru
      _
    %v29 = vld [vmem:[%s1] sm:$0xff]
    %v30 = vld [vmem:[%s1 + $0x8] sm:$0xff]
    %v31 = vld [vmem:[%s1 + $0x10] sm:$0xff]
    %v32 = vld [vmem:[%s1 + $0x18] sm:$0xff]
    %v33 = vld [vmem:[%s2] sm:$0xff]
    %v34 = vld [vmem:[%s2 + $0x8] sm:$0xff]
    %v35 = vld [vmem:[%s2 + $0x10] sm:$0xff]
    %v36 = vld [vmem:[%s2 + $0x18] sm:$0xff]
    %38 = vset.pattern.permute.xlu0 0
    %39 = vperm.xlu0 %38, %v33
    %v40 = vpop.permute.xlu0 %39
    %43 = vset.pattern.permute.xlu0 0
    %44 = vperm.xlu0 %43, %v34
    %v45 = vpop.permute.xlu0 %44
    %48 = vset.pattern.permute.xlu0 0
    %49 = vperm.xlu0 %48, %v35
    %v50 = vpop.permute.xlu0 %49
    %53 = vset.pattern.permute.xlu0 0
    %54 = vperm.xlu0 %53, %v36
    %v55 = vpop.permute.xlu0 %54
    %v57 = vld [vmem:[%s0] sm:$0x1]
    %v58 = vlaneseq
    %v59 = vshrl.u32 %v58, 7
    %v60 = vsub.s32 0, %v59
    %v61 = vrot.slane %v57, %v60
    %63 = vset.pattern.permute.xlu0 0
    %64 = vperm.xlu0 %63, %v29
    %v65 = vpop.permute.xlu0 %64
    %68 = vset.pattern.permute.xlu0 0
    %69 = vperm.xlu0 %68, %v30
    %v70 = vpop.permute.xlu0 %69
    %73 = vset.pattern.permute.xlu0 0
    %74 = vperm.xlu0 %73, %v31
    %v75 = vpop.permute.xlu0 %74
    %78 = vset.pattern.permute.xlu0 0
    %79 = vperm.xlu0 %78, %v32
    %v80 = vpop.permute.xlu0 %79
    %v82 = vmul.f32 %v65, %v61
    %v83 = vmul.f32 %v70, %v61
    %v84 = vmul.f32 %v75, %v61
    %v85 = vmul.f32 %v80, %v61
    %v86 = vadd.f32 %v40, %v82
    %v87 = vadd.f32 %v45, %v83
    %v88 = vadd.f32 %v50, %v84
    %v89 = vadd.f32 %v55, %v85
    %v90 = vld [vmem:[%s0 + $0x1] sm:$0x1]
    %v91 = vlaneseq
    %v92 = vshrl.u32 %v91, 7
    %v93 = vsub.s32 0, %v92
    %v94 = vrot.slane %v90, %v93
    %95 = vset.pattern.permute.xlu0 1
    %96 = vperm.xlu0 %95, %v29
    %v97 = vpop.permute.xlu0 %96
    %99 = vset.pattern.permute.xlu0 1
    %100 = vperm.xlu0 %99, %v30
    %v101 = vpop.permute.xlu0 %100
    %103 = vset.pattern.permute.xlu0 1
    %104 = vperm.xlu0 %103, %v31
    %v105 = vpop.permute.xlu0 %104
    %107 = vset.pattern.permute.xlu0 1
    %108 = vperm.xlu0 %107, %v32
    %v109 = vpop.permute.xlu0 %108
    %v111 = vmul.f32 %v97, %v94
    %v112 = vmul.f32 %v101, %v94
    %v113 = vmul.f32 %v105, %v94
    %v114 = vmul.f32 %v109, %v94
    %v115 = vadd.f32 %v86, %v111
    %v116 = vadd.f32 %v87, %v112
    %v117 = vadd.f32 %v88, %v113
    %v118 = vadd.f32 %v89, %v114
    %v119 = vld [vmem:[%s0 + $0x2] sm:$0x1]
    %v120 = vlaneseq
    %v121 = vshrl.u32 %v120, 7
    %v122 = vsub.s32 0, %v121
    %v123 = vrot.slane %v119, %v122
    %124 = vset.pattern.permute.xlu0 2
    %125 = vperm.xlu0 %124, %v29
    %v126 = vpop.permute.xlu0 %125
    %128 = vset.pattern.permute.xlu0 2
    %129 = vperm.xlu0 %128, %v30
    %v130 = vpop.permute.xlu0 %129
    %132 = vset.pattern.permute.xlu0 2
    %133 = vperm.xlu0 %132, %v31
    %v134 = vpop.permute.xlu0 %133
    %136 = vset.pattern.permute.xlu0 2
    %137 = vperm.xlu0 %136, %v32
    %v138 = vpop.permute.xlu0 %137
    %v140 = vmul.f32 %v126, %v123
    %v141 = vmul.f32 %v130, %v123
    %v142 = vmul.f32 %v134, %v123
    %v143 = vmul.f32 %v138, %v123
    %v144 = vadd.f32 %v115, %v140
    %v145 = vadd.f32 %v116, %v141
    %v146 = vadd.f32 %v117, %v142
    %v147 = vadd.f32 %v118, %v143
    %v148 = vld [vmem:[%s0 + $0x3] sm:$0x1]
    %v149 = vlaneseq
    %v150 = vshrl.u32 %v149, 7
    %v151 = vsub.s32 0, %v150
    %v152 = vrot.slane %v148, %v151
    %153 = vset.pattern.permute.xlu0 3
    %154 = vperm.xlu0 %153, %v29
    %v155 = vpop.permute.xlu0 %154
    %157 = vset.pattern.permute.xlu0 3
    %158 = vperm.xlu0 %157, %v30
    %v159 = vpop.permute.xlu0 %158
    %161 = vset.pattern.permute.xlu0 3
    %162 = vperm.xlu0 %161, %v31
    %v163 = vpop.permute.xlu0 %162
    %165 = vset.pattern.permute.xlu0 3
    %166 = vperm.xlu0 %165, %v32
    %v167 = vpop.permute.xlu0 %166
    %v169 = vmul.f32 %v155, %v152
    %v170 = vmul.f32 %v159, %v152
    %v171 = vmul.f32 %v163, %v152
    %v172 = vmul.f32 %v167, %v152
    %v173 = vadd.f32 %v144, %v169
    %v174 = vadd.f32 %v145, %v170
    %v175 = vadd.f32 %v146, %v171
    %v176 = vadd.f32 %v147, %v172
    %v177 = vmax.f32 %v173, 0.0
    %v178 = vmax.f32 %v174, 0.0
    %v179 = vmax.f32 %v175, 0.0
    %v180 = vmax.f32 %v176, 0.0
    %v181 = vld [vmem:[%s3] sm:$0xff]
    %v182 = vld [vmem:[%s3 + $0x8] sm:$0xff]
    %v183 = vld [vmem:[%s3 + $0x10] sm:$0xff]
    %v184 = vld [vmem:[%s3 + $0x18] sm:$0xff]
    %v185 = vld [vmem:[%s4] sm:$0xff]
    %v186 = vld [vmem:[%s4 + $0x8] sm:$0xff]
    %v187 = vld [vmem:[%s4 + $0x10] sm:$0xff]
    %v188 = vld [vmem:[%s4 + $0x18] sm:$0xff]
    %190 = vset.pattern.permute.xlu0 0
    %191 = vperm.xlu0 %190, %v185
    %v192 = vpop.permute.xlu0 %191
    %195 = vset.pattern.permute.xlu0 0
    %196 = vperm.xlu0 %195, %v186
    %v197 = vpop.permute.xlu0 %196
    %200 = vset.pattern.permute.xlu0 0
    %201 = vperm.xlu0 %200, %v187
    %v202 = vpop.permute.xlu0 %201
    %205 = vset.pattern.permute.xlu0 0
    %206 = vperm.xlu0 %205, %v188
    %v207 = vpop.permute.xlu0 %206
    %vm209 = vcmask 261120
    %v211 = vsel %vm209, %v181, 0
    %v214 = vsel %vm209, %v182, 0
    %v217 = vsel %vm209, %v183, 0
    %v220 = vsel %vm209, %v184, 0
    %222 = vmatprep.subr.mxu0 0.0
    %v223 = vand.u32 %v177, 4294901760
    %224 = vmatpush1.msra.mxu0 %v223
    %225 = vmatprep.subr.mxu0 0.0
    %v226 = vand.u32 %v178, 4294901760
    %227 = vmatpush1.msra.mxu0 %v226
    %228 = vmatprep.subr.mxu0 0.0
    %v229 = vand.u32 %v179, 4294901760
    %230 = vmatpush1.msra.mxu0 %v229
    %231 = vmatprep.subr.mxu0 0.0
    %v232 = vand.u32 %v180, 4294901760
    %233 = vmatpush1.msra.mxu0 %v232
    %234 = vmatprep.subr.mxu0 0.0
    %235 = vmatpush1.msra.mxu0 0.0
    %236 = vmatprep.subr.mxu0 0.0
    %237 = vmatpush1.msra.mxu0 0.0
    %238 = vmatprep.subr.mxu0 0.0
    %239 = vmatpush1.msra.mxu0 0.0
    %240 = vmatprep.subr.mxu0 0.0
    %241 = vmatpush1.msra.mxu0 0.0
    %242 = vmatprep.subr.mxu0 0.0
    %243 = vmatpush1.msra.mxu0 0.0
    %244 = vmatprep.subr.mxu0 0.0
    %245 = vmatpush1.msra.mxu0 0.0
    %246 = vmatprep.subr.mxu0 0.0
    %247 = vmatpush1.msra.mxu0 0.0
    %248 = vmatprep.subr.mxu0 0.0
    %249 = vmatpush1.msra.mxu0 0.0
    %250 = vmatprep.subr.mxu0 0.0
    %251 = vmatpush1.msra.mxu0 0.0
    %252 = vmatprep.subr.mxu0 0.0
    %253 = vmatpush1.msra.mxu0 0.0
    %254 = vmatprep.subr.mxu0 0.0
    %255 = vmatpush1.msra.mxu0 0.0
    %256 = vmatprep.subr.mxu0 0.0
    %257 = vmatpush1.msra.mxu0 0.0
    %258 = vmatprep.subr.mxu0 0.0
    %259 = vmatpush1.msra.mxu0 0.0
    %260 = vmatprep.subr.mxu0 0.0
    %261 = vmatpush1.msra.mxu0 0.0
    %262 = vmatprep.subr.mxu0 0.0
    %263 = vmatpush1.msra.mxu0 0.0
    %264 = vmatprep.subr.mxu0 0.0
    %265 = vmatpush1.msra.mxu0 0.0
    %266 = vmatprep.subr.mxu0 0.0
    %267 = vmatpush1.msra.mxu0 0.0
    %268 = vmatprep.subr.mxu0 0.0
    %269 = vmatpush1.msra.mxu0 0.0
    %270 = vmatprep.subr.mxu0 0.0
    %271 = vmatpush1.msra.mxu0 0.0
    %272 = vmatprep.subr.mxu0 0.0
    %273 = vmatpush1.msra.mxu0 0.0
    %274 = vmatprep.subr.mxu0 0.0
    %275 = vmatpush1.msra.mxu0 0.0
    %276 = vmatprep.subr.mxu0 0.0
    %277 = vmatpush1.msra.mxu0 0.0
    %278 = vmatprep.subr.mxu0 0.0
    %279 = vmatpush1.msra.mxu0 0.0
    %280 = vmatprep.subr.mxu0 0.0
    %281 = vmatpush1.msra.mxu0 0.0
    %282 = vmatprep.subr.mxu0 0.0
    %283 = vmatpush1.msra.mxu0 0.0
    %284 = vmatprep.subr.mxu0 0.0
    %285 = vmatpush1.msra.mxu0 0.0
    %286 = vmatprep.subr.mxu0 0.0
    %287 = vmatpush1.msra.mxu0 0.0
    %288 = vmatprep.subr.mxu0 0.0
    %289 = vmatpush1.msra.mxu0 0.0
    %290 = vmatprep.mubr.f32.mxu0 0.0
    %v291 = vand.u32 %v211, 4294901760
    %v292 = vsub.f32 %v211, %v291
    %v293 = vand.u32 %v292, 4294901760
    %v294 = vsub.f32 %v292, %v293
    %v295 = vand.u32 %v294, 4294901760
    %296 = vmatmul.mubr.f32.gmra.mrb[0].mxu0 %v295
    %v297 = vpop.f32.mrb[0].mxu0
    %v298 = vadd.f32 %v192, %v297
    %v299 = vpop.f32.mrb[0].mxu0
    %300 = vmatprep.mubr.f32.mxu0 0.0
    %v301 = vand.u32 %v214, 4294901760
    %v302 = vsub.f32 %v214, %v301
    %v303 = vand.u32 %v302, 4294901760
    %v304 = vsub.f32 %v302, %v303
    %v305 = vand.u32 %v304, 4294901760
    %306 = vmatmul.mubr.f32.gmra.mrb[0].mxu0 %v305
    %v307 = vpop.f32.mrb[0].mxu0
    %v308 = vadd.f32 %v197, %v307
    %v309 = vpop.f32.mrb[0].mxu0
    %310 = vmatprep.mubr.f32.mxu0 0.0
    %v311 = vand.u32 %v217, 4294901760
    %v312 = vsub.f32 %v217, %v311
    %v313 = vand.u32 %v312, 4294901760
    %v314 = vsub.f32 %v312, %v313
    %v315 = vand.u32 %v314, 4294901760
    %316 = vmatmul.mubr.f32.gmra.mrb[0].mxu0 %v315
    %v317 = vpop.f32.mrb[0].mxu0
    %v318 = vadd.f32 %v202, %v317
    %v319 = vpop.f32.mrb[0].mxu0
    %320 = vmatprep.mubr.f32.mxu0 0.0
    %v321 = vand.u32 %v220, 4294901760
    %v322 = vsub.f32 %v220, %v321
    %v323 = vand.u32 %v322, 4294901760
    %v324 = vsub.f32 %v322, %v323
    %v325 = vand.u32 %v324, 4294901760
    %326 = vmatmul.mubr.f32.gmra.mrb[0].mxu0 %v325
    %v327 = vpop.f32.mrb[0].mxu0
    %v328 = vadd.f32 %v207, %v327
    %v329 = vpop.f32.mrb[0].mxu0
    %330 = vdwg.mxu0
    %331 = vmatprep.subr.mxu0 0.0
    %v332 = vand.u32 %v177, 4294901760
    %v333 = vsub.f32 %v177, %v332
    %v334 = vand.u32 %v333, 4294901760
    %v335 = vsub.f32 %v333, %v334
    %v336 = vand.u32 %v335, 4294901760
    %337 = vmatpush1.msra.mxu0 %v336
    %338 = vmatprep.subr.mxu0 0.0
    %v339 = vand.u32 %v178, 4294901760
    %v340 = vsub.f32 %v178, %v339
    %v341 = vand.u32 %v340, 4294901760
    %v342 = vsub.f32 %v340, %v341
    %v343 = vand.u32 %v342, 4294901760
    %344 = vmatpush1.msra.mxu0 %v343
    %345 = vmatprep.subr.mxu0 0.0
    %v346 = vand.u32 %v179, 4294901760
    %v347 = vsub.f32 %v179, %v346
    %v348 = vand.u32 %v347, 4294901760
    %v349 = vsub.f32 %v347, %v348
    %v350 = vand.u32 %v349, 4294901760
    %351 = vmatpush1.msra.mxu0 %v350
    %352 = vmatprep.subr.mxu0 0.0
    %v353 = vand.u32 %v180, 4294901760
    %v354 = vsub.f32 %v180, %v353
    %v355 = vand.u32 %v354, 4294901760
    %v356 = vsub.f32 %v354, %v355
    %v357 = vand.u32 %v356, 4294901760
    %358 = vmatpush1.msra.mxu0 %v357
    %359 = vmatprep.subr.mxu0 0.0
    %360 = vmatpush1.msra.mxu0 0.0
    %361 = vmatprep.subr.mxu0 0.0
    %362 = vmatpush1.msra.mxu0 0.0
    %363 = vmatprep.subr.mxu0 0.0
    %364 = vmatpush1.msra.mxu0 0.0
    %365 = vmatprep.subr.mxu0 0.0
    %366 = vmatpush1.msra.mxu0 0.0
    %367 = vmatprep.subr.mxu0 0.0
    %368 = vmatpush1.msra.mxu0 0.0
    %369 = vmatprep.subr.mxu0 0.0
    %370 = vmatpush1.msra.mxu0 0.0
    %371 = vmatprep.subr.mxu0 0.0
    %372 = vmatpush1.msra.mxu0 0.0
    %373 = vmatprep.subr.mxu0 0.0
    %374 = vmatpush1.msra.mxu0 0.0
    %375 = vmatprep.subr.mxu0 0.0
    %376 = vmatpush1.msra.mxu0 0.0
    %377 = vmatprep.subr.mxu0 0.0
    %378 = vmatpush1.msra.mxu0 0.0
    %379 = vmatprep.subr.mxu0 0.0
    %380 = vmatpush1.msra.mxu0 0.0
    %381 = vmatprep.subr.mxu0 0.0
    %382 = vmatpush1.msra.mxu0 0.0
    %383 = vmatprep.subr.mxu0 0.0
    %384 = vmatpush1.msra.mxu0 0.0
    %385 = vmatprep.subr.mxu0 0.0
    %386 = vmatpush1.msra.mxu0 0.0
    %387 = vmatprep.subr.mxu0 0.0
    %388 = vmatpush1.msra.mxu0 0.0
    %389 = vmatprep.subr.mxu0 0.0
    %390 = vmatpush1.msra.mxu0 0.0
    %391 = vmatprep.subr.mxu0 0.0
    %392 = vmatpush1.msra.mxu0 0.0
    %393 = vmatprep.subr.mxu0 0.0
    %394 = vmatpush1.msra.mxu0 0.0
    %395 = vmatprep.subr.mxu0 0.0
    %396 = vmatpush1.msra.mxu0 0.0
    %397 = vmatprep.subr.mxu0 0.0
    %398 = vmatpush1.msra.mxu0 0.0
    %399 = vmatprep.subr.mxu0 0.0
    %400 = vmatpush1.msra.mxu0 0.0
    %401 = vmatprep.subr.mxu0 0.0
    %402 = vmatpush1.msra.mxu0 0.0
    %403 = vmatprep.subr.mxu0 0.0
    %404 = vmatpush1.msra.mxu0 0.0
    %405 = vmatprep.subr.mxu0 0.0
    %406 = vmatpush1.msra.mxu0 0.0
    %407 = vmatprep.subr.mxu0 0.0
    %408 = vmatpush1.msra.mxu0 0.0
    %409 = vmatprep.subr.mxu0 0.0
    %410 = vmatpush1.msra.mxu0 0.0
    %411 = vmatprep.subr.mxu0 0.0
    %412 = vmatpush1.msra.mxu0 0.0
    %413 = vmatprep.subr.mxu0 0.0
    %414 = vmatpush1.msra.mxu0 0.0
    %415 = vmatprep.mubr.f32.mxu0 0.0
    %v416 = vand.u32 %v211, 4294901760
    %417 = vmatmul.mubr.f32.gmra.mrb[0].mxu0 %v416
    %v418 = vpop.f32.mrb[0].mxu0
    %v419 = vadd.f32 %v298, %v418
    %v420 = vpop.f32.mrb[0].mxu0
    %421 = vmatprep.mubr.f32.mxu0 0.0
    %v422 = vand.u32 %v214, 4294901760
    %423 = vmatmul.mubr.f32.gmra.mrb[0].mxu0 %v422
    %v424 = vpop.f32.mrb[0].mxu0
    %v425 = vadd.f32 %v308, %v424
    %v426 = vpop.f32.mrb[0].mxu0
    %427 = vmatprep.mubr.f32.mxu0 0.0
    %v428 = vand.u32 %v217, 4294901760
    %429 = vmatmul.mubr.f32.gmra.mrb[0].mxu0 %v428
    %v430 = vpop.f32.mrb[0].mxu0
    %v431 = vadd.f32 %v318, %v430
    %v432 = vpop.f32.mrb[0].mxu0
    %433 = vmatprep.mubr.f32.mxu0 0.0
    %v434 = vand.u32 %v220, 4294901760
    %435 = vmatmul.mubr.f32.gmra.mrb[0].mxu0 %v434
    %v436 = vpop.f32.mrb[0].mxu0
    %v437 = vadd.f32 %v328, %v436
    %v438 = vpop.f32.mrb[0].mxu0
    %439 = vdwg.mxu0
    %440 = vmatprep.subr.mxu0 0.0
    %v441 = vand.u32 %v177, 4294901760
    %v442 = vsub.f32 %v177, %v441
    %443 = vmatpush1.msra.mxu0 %v442
    %444 = vmatprep.subr.mxu0 0.0
    %v445 = vand.u32 %v178, 4294901760
    %v446 = vsub.f32 %v178, %v445
    %447 = vmatpush1.msra.mxu0 %v446
    %448 = vmatprep.subr.mxu0 0.0
    %v449 = vand.u32 %v179, 4294901760
    %v450 = vsub.f32 %v179, %v449
    %451 = vmatpush1.msra.mxu0 %v450
    %452 = vmatprep.subr.mxu0 0.0
    %v453 = vand.u32 %v180, 4294901760
    %v454 = vsub.f32 %v180, %v453
    %455 = vmatpush1.msra.mxu0 %v454
    %456 = vmatprep.subr.mxu0 0.0
    %457 = vmatpush1.msra.mxu0 0.0
    %458 = vmatprep.subr.mxu0 0.0
    %459 = vmatpush1.msra.mxu0 0.0
    %460 = vmatprep.subr.mxu0 0.0
    %461 = vmatpush1.msra.mxu0 0.0
    %462 = vmatprep.subr.mxu0 0.0
    %463 = vmatpush1.msra.mxu0 0.0
    %464 = vmatprep.subr.mxu0 0.0
    %465 = vmatpush1.msra.mxu0 0.0
    %466 = vmatprep.subr.mxu0 0.0
    %467 = vmatpush1.msra.mxu0 0.0
    %468 = vmatprep.subr.mxu0 0.0
    %469 = vmatpush1.msra.mxu0 0.0
    %470 = vmatprep.subr.mxu0 0.0
    %471 = vmatpush1.msra.mxu0 0.0
    %472 = vmatprep.subr.mxu0 0.0
    %473 = vmatpush1.msra.mxu0 0.0
    %474 = vmatprep.subr.mxu0 0.0
    %475 = vmatpush1.msra.mxu0 0.0
    %476 = vmatprep.subr.mxu0 0.0
    %477 = vmatpush1.msra.mxu0 0.0
    %478 = vmatprep.subr.mxu0 0.0
    %479 = vmatpush1.msra.mxu0 0.0
    %480 = vmatprep.subr.mxu0 0.0
    %481 = vmatpush1.msra.mxu0 0.0
    %482 = vmatprep.subr.mxu0 0.0
    %483 = vmatpush1.msra.mxu0 0.0
    %484 = vmatprep.subr.mxu0 0.0
    %485 = vmatpush1.msra.mxu0 0.0
    %486 = vmatprep.subr.mxu0 0.0
    %487 = vmatpush1.msra.mxu0 0.0
    %488 = vmatprep.subr.mxu0 0.0
    %489 = vmatpush1.msra.mxu0 0.0
    %490 = vmatprep.subr.mxu0 0.0
    %491 = vmatpush1.msra.mxu0 0.0
    %492 = vmatprep.subr.mxu0 0.0
    %493 = vmatpush1.msra.mxu0 0.0
    %494 = vmatprep.subr.mxu0 0.0
    %495 = vmatpush1.msra.mxu0 0.0
    %496 = vmatprep.subr.mxu0 0.0
    %497 = vmatpush1.msra.mxu0 0.0
    %498 = vmatprep.subr.mxu0 0.0
    %499 = vmatpush1.msra.mxu0 0.0
    %500 = vmatprep.subr.mxu0 0.0
    %501 = vmatpush1.msra.mxu0 0.0
    %502 = vmatprep.subr.mxu0 0.0
    %503 = vmatpush1.msra.mxu0 0.0
    %504 = vmatprep.subr.mxu0 0.0
    %505 = vmatpush1.msra.mxu0 0.0
    %506 = vmatprep.subr.mxu0 0.0
    %507 = vmatpush1.msra.mxu0 0.0
    %508 = vmatprep.subr.mxu0 0.0
    %509 = vmatpush1.msra.mxu0 0.0
    %510 = vmatprep.subr.mxu0 0.0
    %511 = vmatpush1.msra.mxu0 0.0
    %512 = vmatprep.mubr.f32.mxu0 0.0
    %v513 = vand.u32 %v211, 4294901760
    %v514 = vsub.f32 %v211, %v513
    %515 = vmatmul.mubr.f32.gmra.mrb[0].mxu0 %v514
    %v516 = vpop.f32.mrb[0].mxu0
    %v517 = vadd.f32 %v419, %v516
    %v518 = vpop.f32.mrb[0].mxu0
    %519 = vmatprep.mubr.f32.mxu0 0.0
    %v520 = vand.u32 %v214, 4294901760
    %v521 = vsub.f32 %v214, %v520
    %522 = vmatmul.mubr.f32.gmra.mrb[0].mxu0 %v521
    %v523 = vpop.f32.mrb[0].mxu0
    %v524 = vadd.f32 %v425, %v523
    %v525 = vpop.f32.mrb[0].mxu0
    %526 = vmatprep.mubr.f32.mxu0 0.0
    %v527 = vand.u32 %v217, 4294901760
    %v528 = vsub.f32 %v217, %v527
    %529 = vmatmul.mubr.f32.gmra.mrb[0].mxu0 %v528
    %v530 = vpop.f32.mrb[0].mxu0
    %v531 = vadd.f32 %v431, %v530
    %v532 = vpop.f32.mrb[0].mxu0
    %533 = vmatprep.mubr.f32.mxu0 0.0
    %v534 = vand.u32 %v220, 4294901760
    %v535 = vsub.f32 %v220, %v534
    %536 = vmatmul.mubr.f32.gmra.mrb[0].mxu0 %v535
    %v537 = vpop.f32.mrb[0].mxu0
    %v538 = vadd.f32 %v437, %v537
    %v539 = vpop.f32.mrb[0].mxu0
    %540 = vdwg.mxu0
    %541 = vmatprep.subr.mxu0 0.0
    %v542 = vand.u32 %v177, 4294901760
    %543 = vmatpush1.msra.mxu0 %v542
    %544 = vmatprep.subr.mxu0 0.0
    %v545 = vand.u32 %v178, 4294901760
    %546 = vmatpush1.msra.mxu0 %v545
    %547 = vmatprep.subr.mxu0 0.0
    %v548 = vand.u32 %v179, 4294901760
    %549 = vmatpush1.msra.mxu0 %v548
    %550 = vmatprep.subr.mxu0 0.0
    %v551 = vand.u32 %v180, 4294901760
    %552 = vmatpush1.msra.mxu0 %v551
    %553 = vmatprep.subr.mxu0 0.0
    %554 = vmatpush1.msra.mxu0 0.0
    %555 = vmatprep.subr.mxu0 0.0
    %556 = vmatpush1.msra.mxu0 0.0
    %557 = vmatprep.subr.mxu0 0.0
    %558 = vmatpush1.msra.mxu0 0.0
    %559 = vmatprep.subr.mxu0 0.0
    %560 = vmatpush1.msra.mxu0 0.0
    %561 = vmatprep.subr.mxu0 0.0
    %562 = vmatpush1.msra.mxu0 0.0
    %563 = vmatprep.subr.mxu0 0.0
    %564 = vmatpush1.msra.mxu0 0.0
    %565 = vmatprep.subr.mxu0 0.0
    %566 = vmatpush1.msra.mxu0 0.0
    %567 = vmatprep.subr.mxu0 0.0
    %568 = vmatpush1.msra.mxu0 0.0
    %569 = vmatprep.subr.mxu0 0.0
    %570 = vmatpush1.msra.mxu0 0.0
    %571 = vmatprep.subr.mxu0 0.0
    %572 = vmatpush1.msra.mxu0 0.0
    %573 = vmatprep.subr.mxu0 0.0
    %574 = vmatpush1.msra.mxu0 0.0
    %575 = vmatprep.subr.mxu0 0.0
    %576 = vmatpush1.msra.mxu0 0.0
    %577 = vmatprep.subr.mxu0 0.0
    %578 = vmatpush1.msra.mxu0 0.0
    %579 = vmatprep.subr.mxu0 0.0
    %580 = vmatpush1.msra.mxu0 0.0
    %581 = vmatprep.subr.mxu0 0.0
    %582 = vmatpush1.msra.mxu0 0.0
    %583 = vmatprep.subr.mxu0 0.0
    %584 = vmatpush1.msra.mxu0 0.0
    %585 = vmatprep.subr.mxu0 0.0
    %586 = vmatpush1.msra.mxu0 0.0
    %587 = vmatprep.subr.mxu0 0.0
    %588 = vmatpush1.msra.mxu0 0.0
    %589 = vmatprep.subr.mxu0 0.0
    %590 = vmatpush1.msra.mxu0 0.0
    %591 = vmatprep.subr.mxu0 0.0
    %592 = vmatpush1.msra.mxu0 0.0
    %593 = vmatprep.subr.mxu0 0.0
    %594 = vmatpush1.msra.mxu0 0.0
    %595 = vmatprep.subr.mxu0 0.0
    %596 = vmatpush1.msra.mxu0 0.0
    %597 = vmatprep.subr.mxu0 0.0
    %598 = vmatpush1.msra.mxu0 0.0
    %599 = vmatprep.subr.mxu0 0.0
    %600 = vmatpush1.msra.mxu0 0.0
    %601 = vmatprep.subr.mxu0 0.0
    %602 = vmatpush1.msra.mxu0 0.0
    %603 = vmatprep.subr.mxu0 0.0
    %604 = vmatpush1.msra.mxu0 0.0
    %605 = vmatprep.subr.mxu0 0.0
    %606 = vmatpush1.msra.mxu0 0.0
    %607 = vmatprep.subr.mxu0 0.0
    %608 = vmatpush1.msra.mxu0 0.0
    %609 = vmatprep.mubr.f32.mxu0 0.0
    %v610 = vand.u32 %v211, 4294901760
    %v611 = vsub.f32 %v211, %v610
    %v612 = vand.u32 %v611, 4294901760
    %613 = vmatmul.mubr.f32.gmra.mrb[0].mxu0 %v612
    %v614 = vpop.f32.mrb[0].mxu0
    %v615 = vadd.f32 %v517, %v614
    %v616 = vpop.f32.mrb[0].mxu0
    %617 = vmatprep.mubr.f32.mxu0 0.0
    %v618 = vand.u32 %v214, 4294901760
    %v619 = vsub.f32 %v214, %v618
    %v620 = vand.u32 %v619, 4294901760
    %621 = vmatmul.mubr.f32.gmra.mrb[0].mxu0 %v620
    %v622 = vpop.f32.mrb[0].mxu0
    %v623 = vadd.f32 %v524, %v622
    %v624 = vpop.f32.mrb[0].mxu0
    %625 = vmatprep.mubr.f32.mxu0 0.0
    %v626 = vand.u32 %v217, 4294901760
    %v627 = vsub.f32 %v217, %v626
    %v628 = vand.u32 %v627, 4294901760
    %629 = vmatmul.mubr.f32.gmra.mrb[0].mxu0 %v628
    %v630 = vpop.f32.mrb[0].mxu0
    %v631 = vadd.f32 %v531, %v630
    %v632 = vpop.f32.mrb[0].mxu0
    %633 = vmatprep.mubr.f32.mxu0 0.0
    %v634 = vand.u32 %v220, 4294901760
    %v635 = vsub.f32 %v220, %v634
    %v636 = vand.u32 %v635, 4294901760
    %637 = vmatmul.mubr.f32.gmra.mrb[0].mxu0 %v636
    %v638 = vpop.f32.mrb[0].mxu0
    %v639 = vadd.f32 %v538, %v638
    %v640 = vpop.f32.mrb[0].mxu0
    %641 = vdwg.mxu0
    %642 = vmatprep.subr.mxu0 0.0
    %v643 = vand.u32 %v177, 4294901760
    %v644 = vsub.f32 %v177, %v643
    %v645 = vand.u32 %v644, 4294901760
    %646 = vmatpush1.msra.mxu0 %v645
    %647 = vmatprep.subr.mxu0 0.0
    %v648 = vand.u32 %v178, 4294901760
    %v649 = vsub.f32 %v178, %v648
    %v650 = vand.u32 %v649, 4294901760
    %651 = vmatpush1.msra.mxu0 %v650
    %652 = vmatprep.subr.mxu0 0.0
    %v653 = vand.u32 %v179, 4294901760
    %v654 = vsub.f32 %v179, %v653
    %v655 = vand.u32 %v654, 4294901760
    %656 = vmatpush1.msra.mxu0 %v655
    %657 = vmatprep.subr.mxu0 0.0
    %v658 = vand.u32 %v180, 4294901760
    %v659 = vsub.f32 %v180, %v658
    %v660 = vand.u32 %v659, 4294901760
    %661 = vmatpush1.msra.mxu0 %v660
    %662 = vmatprep.subr.mxu0 0.0
    %663 = vmatpush1.msra.mxu0 0.0
    %664 = vmatprep.subr.mxu0 0.0
    %665 = vmatpush1.msra.mxu0 0.0
    %666 = vmatprep.subr.mxu0 0.0
    %667 = vmatpush1.msra.mxu0 0.0
    %668 = vmatprep.subr.mxu0 0.0
    %669 = vmatpush1.msra.mxu0 0.0
    %670 = vmatprep.subr.mxu0 0.0
    %671 = vmatpush1.msra.mxu0 0.0
    %672 = vmatprep.subr.mxu0 0.0
    %673 = vmatpush1.msra.mxu0 0.0
    %674 = vmatprep.subr.mxu0 0.0
    %675 = vmatpush1.msra.mxu0 0.0
    %676 = vmatprep.subr.mxu0 0.0
    %677 = vmatpush1.msra.mxu0 0.0
    %678 = vmatprep.subr.mxu0 0.0
    %679 = vmatpush1.msra.mxu0 0.0
    %680 = vmatprep.subr.mxu0 0.0
    %681 = vmatpush1.msra.mxu0 0.0
    %682 = vmatprep.subr.mxu0 0.0
    %683 = vmatpush1.msra.mxu0 0.0
    %684 = vmatprep.subr.mxu0 0.0
    %685 = vmatpush1.msra.mxu0 0.0
    %686 = vmatprep.subr.mxu0 0.0
    %687 = vmatpush1.msra.mxu0 0.0
    %688 = vmatprep.subr.mxu0 0.0
    %689 = vmatpush1.msra.mxu0 0.0
    %690 = vmatprep.subr.mxu0 0.0
    %691 = vmatpush1.msra.mxu0 0.0
    %692 = vmatprep.subr.mxu0 0.0
    %693 = vmatpush1.msra.mxu0 0.0
    %694 = vmatprep.subr.mxu0 0.0
    %695 = vmatpush1.msra.mxu0 0.0
    %696 = vmatprep.subr.mxu0 0.0
    %697 = vmatpush1.msra.mxu0 0.0
    %698 = vmatprep.subr.mxu0 0.0
    %699 = vmatpush1.msra.mxu0 0.0
    %700 = vmatprep.subr.mxu0 0.0
    %701 = vmatpush1.msra.mxu0 0.0
    %702 = vmatprep.subr.mxu0 0.0
    %703 = vmatpush1.msra.mxu0 0.0
    %704 = vmatprep.subr.mxu0 0.0
    %705 = vmatpush1.msra.mxu0 0.0
    %706 = vmatprep.subr.mxu0 0.0
    %707 = vmatpush1.msra.mxu0 0.0
    %708 = vmatprep.subr.mxu0 0.0
    %709 = vmatpush1.msra.mxu0 0.0
    %710 = vmatprep.subr.mxu0 0.0
    %711 = vmatpush1.msra.mxu0 0.0
    %712 = vmatprep.subr.mxu0 0.0
    %713 = vmatpush1.msra.mxu0 0.0
    %714 = vmatprep.subr.mxu0 0.0
    %715 = vmatpush1.msra.mxu0 0.0
    %716 = vmatprep.subr.mxu0 0.0
    %717 = vmatpush1.msra.mxu0 0.0
    %718 = vmatprep.mubr.f32.mxu0 0.0
    %v719 = vand.u32 %v211, 4294901760
    %720 = vmatmul.mubr.f32.gmra.mrb[0].mxu0 %v719
    %v721 = vpop.f32.mrb[0].mxu0
    %v722 = vadd.f32 %v615, %v721
    %v723 = vpop.f32.mrb[0].mxu0
    %724 = vmatprep.mubr.f32.mxu0 0.0
    %v725 = vand.u32 %v214, 4294901760
    %726 = vmatmul.mubr.f32.gmra.mrb[0].mxu0 %v725
    %v727 = vpop.f32.mrb[0].mxu0
    %v728 = vadd.f32 %v623, %v727
    %v729 = vpop.f32.mrb[0].mxu0
    %730 = vmatprep.mubr.f32.mxu0 0.0
    %v731 = vand.u32 %v217, 4294901760
    %732 = vmatmul.mubr.f32.gmra.mrb[0].mxu0 %v731
    %v733 = vpop.f32.mrb[0].mxu0
    %v734 = vadd.f32 %v631, %v733
    %v735 = vpop.f32.mrb[0].mxu0
    %736 = vmatprep.mubr.f32.mxu0 0.0
    %v737 = vand.u32 %v220, 4294901760
    %738 = vmatmul.mubr.f32.gmra.mrb[0].mxu0 %v737
    %v739 = vpop.f32.mrb[0].mxu0
    %v740 = vadd.f32 %v639, %v739
    %v741 = vpop.f32.mrb[0].mxu0
    %742 = vdwg.mxu0
    %743 = vmatprep.subr.mxu0 0.0
    %v744 = vand.u32 %v177, 4294901760
    %745 = vmatpush1.msra.mxu0 %v744
    %746 = vmatprep.subr.mxu0 0.0
    %v747 = vand.u32 %v178, 4294901760
    %748 = vmatpush1.msra.mxu0 %v747
    %749 = vmatprep.subr.mxu0 0.0
    %v750 = vand.u32 %v179, 4294901760
    %751 = vmatpush1.msra.mxu0 %v750
    %752 = vmatprep.subr.mxu0 0.0
    %v753 = vand.u32 %v180, 4294901760
    %754 = vmatpush1.msra.mxu0 %v753
    %755 = vmatprep.subr.mxu0 0.0
    %756 = vmatpush1.msra.mxu0 0.0
    %757 = vmatprep.subr.mxu0 0.0
    %758 = vmatpush1.msra.mxu0 0.0
    %759 = vmatprep.subr.mxu0 0.0
    %760 = vmatpush1.msra.mxu0 0.0
    %761 = vmatprep.subr.mxu0 0.0
    %762 = vmatpush1.msra.mxu0 0.0
    %763 = vmatprep.subr.mxu0 0.0
    %764 = vmatpush1.msra.mxu0 0.0
    %765 = vmatprep.subr.mxu0 0.0
    %766 = vmatpush1.msra.mxu0 0.0
    %767 = vmatprep.subr.mxu0 0.0
    %768 = vmatpush1.msra.mxu0 0.0
    %769 = vmatprep.subr.mxu0 0.0
    %770 = vmatpush1.msra.mxu0 0.0
    %771 = vmatprep.subr.mxu0 0.0
    %772 = vmatpush1.msra.mxu0 0.0
    %773 = vmatprep.subr.mxu0 0.0
    %774 = vmatpush1.msra.mxu0 0.0
    %775 = vmatprep.subr.mxu0 0.0
    %776 = vmatpush1.msra.mxu0 0.0
    %777 = vmatprep.subr.mxu0 0.0
    %778 = vmatpush1.msra.mxu0 0.0
    %779 = vmatprep.subr.mxu0 0.0
    %780 = vmatpush1.msra.mxu0 0.0
    %781 = vmatprep.subr.mxu0 0.0
    %782 = vmatpush1.msra.mxu0 0.0
    %783 = vmatprep.subr.mxu0 0.0
    %784 = vmatpush1.msra.mxu0 0.0
    %785 = vmatprep.subr.mxu0 0.0
    %786 = vmatpush1.msra.mxu0 0.0
    %787 = vmatprep.subr.mxu0 0.0
    %788 = vmatpush1.msra.mxu0 0.0
    %789 = vmatprep.subr.mxu0 0.0
    %790 = vmatpush1.msra.mxu0 0.0
    %791 = vmatprep.subr.mxu0 0.0
    %792 = vmatpush1.msra.mxu0 0.0
    %793 = vmatprep.subr.mxu0 0.0
    %794 = vmatpush1.msra.mxu0 0.0
    %795 = vmatprep.subr.mxu0 0.0
    %796 = vmatpush1.msra.mxu0 0.0
    %797 = vmatprep.subr.mxu0 0.0
    %798 = vmatpush1.msra.mxu0 0.0
    %799 = vmatprep.subr.mxu0 0.0
    %800 = vmatpush1.msra.mxu0 0.0
    %801 = vmatprep.subr.mxu0 0.0
    %802 = vmatpush1.msra.mxu0 0.0
    %803 = vmatprep.subr.mxu0 0.0
    %804 = vmatpush1.msra.mxu0 0.0
    %805 = vmatprep.subr.mxu0 0.0
    %806 = vmatpush1.msra.mxu0 0.0
    %807 = vmatprep.subr.mxu0 0.0
    %808 = vmatpush1.msra.mxu0 0.0
    %809 = vmatprep.subr.mxu0 0.0
    %810 = vmatpush1.msra.mxu0 0.0
    %811 = vmatprep.mubr.f32.mxu0 0.0
    %v812 = vand.u32 %v211, 4294901760
    %813 = vmatmul.mubr.f32.gmra.mrb[0].mxu0 %v812
    %v814 = vpop.f32.mrb[0].mxu0
    %v815 = vadd.f32 %v722, %v814
    %v816 = vpop.f32.mrb[0].mxu0
    %817 = vmatprep.mubr.f32.mxu0 0.0
    %v818 = vand.u32 %v214, 4294901760
    %819 = vmatmul.mubr.f32.gmra.mrb[0].mxu0 %v818
    %v820 = vpop.f32.mrb[0].mxu0
    %v821 = vadd.f32 %v728, %v820
    %v822 = vpop.f32.mrb[0].mxu0
    %823 = vmatprep.mubr.f32.mxu0 0.0
    %v824 = vand.u32 %v217, 4294901760
    %825 = vmatmul.mubr.f32.gmra.mrb[0].mxu0 %v824
    %v826 = vpop.f32.mrb[0].mxu0
    %v827 = vadd.f32 %v734, %v826
    %v828 = vpop.f32.mrb[0].mxu0
    %829 = vmatprep.mubr.f32.mxu0 0.0
    %v830 = vand.u32 %v220, 4294901760
    %831 = vmatmul.mubr.f32.gmra.mrb[0].mxu0 %v830
    %v832 = vpop.f32.mrb[0].mxu0
    %v833 = vadd.f32 %v740, %v832
    %v834 = vpop.f32.mrb[0].mxu0
    %835 = vdwg.mxu0
    %v836 = vmax.f32 %v815, 0.0
    %v837 = vmax.f32 %v821, 0.0
    %v838 = vmax.f32 %v827, 0.0
    %v839 = vmax.f32 %v833, 0.0
    %v840 = vld [vmem:[%s5] sm:$0xff]
    %v841 = vld [vmem:[%s5 + $0x8] sm:$0xff]
    %v842 = vld [vmem:[%s5 + $0x10] sm:$0xff]
    %v843 = vld [vmem:[%s5 + $0x18] sm:$0xff]
    %845 = vset.pattern.permute.xlu0 0
    %846 = vperm.xlu0 %845, %v840
    %v847 = vpop.permute.xlu0 %846
    %850 = vset.pattern.permute.xlu0 0
    %851 = vperm.xlu0 %850, %v841
    %v852 = vpop.permute.xlu0 %851
    %855 = vset.pattern.permute.xlu0 0
    %856 = vperm.xlu0 %855, %v842
    %v857 = vpop.permute.xlu0 %856
    %860 = vset.pattern.permute.xlu0 0
    %861 = vperm.xlu0 %860, %v843
    %v862 = vpop.permute.xlu0 %861
    %v864 = vmul.f32 %v847, %v836
    %v865 = vmul.f32 %v852, %v837
    %v866 = vmul.f32 %v857, %v838
    %v867 = vmul.f32 %v862, %v839
    %v868 = vadd.f32 %v864, %v865
    %v869 = vadd.f32 %v868, %v866
    %v870 = vadd.f32 %v869, %v867
    %v871 = vrot.slane %v870, 4
    %v872 = vadd.f32 %v870, %v871
    %v873 = vrot.slane %v872, 2
    %v874 = vadd.f32 %v872, %v873
    %v875 = vrot.slane %v874, 1
    %v876 = vadd.f32 %v874, %v875
    %v877 = vld [vmem:[#allocation2] sm:$0x1]
    %879 = vset.pattern.permute.xlu0 0
    %880 = vperm.xlu0 %879, %v877
    %v881 = vpop.permute.xlu0 %880
    %v883 = vlaneseq
    %v884 = vshrl.u32 %v883, 7
    %v885 = vsub.s32 0, %v884
    %v886 = vrot.slane %v881, %v885
    %v887 = vadd.f32 %v876, %v886
    %888 = vst [vmem:[#allocation3] sm:$0x1] %v887
    // Predicated region
    $region30: #{tpu_custom_call.1} parent=1 // pred_check
      _
    $region31: #{tpu_custom_call.1} parent=1 // pred_check_branch
      %890 = sbr.rel (0) target = $region33
    $region32: #{tpu_custom_call.1} parent=1 // pred_region
      %s892 = ssub.s32 16, 16
      %893 = vsyncadd [#allocation4], %s892
      %s895 = sshll.u32 [#allocation3], 4
      %s896 = int_to_ptr.vmem [resolvable:$true] %s895
      %898 = dma.vmem_to_hbm [thread:$0]  %s896, 16, %s7, [#allocation4]
    $region33: #{tpu_custom_call.1} parent=1 // pred_fallthru
      _
    // Predicated region
    $region34: #{tpu_custom_call.1} parent=1 // pred_check
      _
    $region35: #{tpu_custom_call.1} parent=1 // pred_check_branch
      %900 = sbr.rel (0) target = $region37
    $region36: #{tpu_custom_call.1} parent=1 // pred_region
      %901 = dma.done [#allocation4], 16
    $region37: #{tpu_custom_call.1} parent=1 // pred_fallthru
      _
    %902 = vsyncpa [#allocation4], 1

</llo_original>
